<compile_context>
chip_gen: v5e
topology: v5e:2x2
jax: 0.10.0
libtpu: 0.0.40
codegen_flags: <defaults>
</compile_context>

<pallas_src>
import jax
import jax.numpy as jnp
from jax import lax
from jax.experimental import pallas as pl
from jax.experimental.pallas import tpu as pltpu


# ----------------------------------------------------------------------------
# Pallas kernel
# ----------------------------------------------------------------------------
def _decoder_block_kernel(x_ref, xh_ref, w1_ref, sb1_ref, wd_ref, sb2_ref,
                          w3_ref, sb3_ref, o_ref):
    thw = x_ref.shape[0]          # tile_h * W rows of the flattened image
    W = xh_ref.shape[0]           # image width (one halo row)

    def mm(a, w):
        # bf16 MXU matmul with f32 accumulation.
        return jnp.dot(a.astype(jnp.bfloat16), w,
                       preferred_element_type=jnp.float32)

    # ---- conv1 (1x1) + BN1 + ReLU on the tile and its one-row halo ----------
    w1 = w1_ref[...]
    s1 = sb1_ref[0:1, :]
    b1 = sb1_ref[1:2, :]
    h00 = jnp.maximum(mm(x_ref[...], w1) * s1 + b1, 0.0)        # (thw, C4)
    h_halo = jnp.maximum(mm(xh_ref[...], w1) * s1 + b1, 0.0)    # (W,   C4)

    # Image boundary: the row below the last tile does not exist -> zero it.
    is_last = pl.program_id(1) == pl.num_programs(1) - 1
    h_halo = jnp.where(is_last, 0.0, 1.0) * h_halo

    # Row shift p+1: sublane-aligned offset-W slice (W % 8 == 0) + halo row.
    if thw == W:
        h10 = h_halo
    else:
        h10 = jnp.concatenate([h00[W:, :], h_halo], axis=0)     # (thw, C4)

    # Column shift q+1 via an XLU roll (shift thw-1 == roll by -1); the wrap
    # rows are exactly the q == W-1 rows that q_ok masks anyway.
    q = lax.broadcasted_iota(jnp.int32, (thw, 1), 0) % W
    q_ok = q != (W - 1)
    h01 = jnp.where(q_ok, pltpu.roll(h00, thw - 1, 0), 0.0)     # h[p,   q+1]
    h11 = jnp.where(q_ok, pltpu.roll(h10, thw - 1, 0), 0.0)     # h[p+1, q+1]

    # ---- ConvTranspose2d(3, s=2, p=1, op=1): ONE block-structured matmul ----
    # Columns of `d` are the 4 output phases [d00 | d01 | d10 | d11].
    hcat = jnp.concatenate([h00, h01, h10, h11], axis=1)        # (thw, 4*C4)
    d = mm(hcat, wd_ref[...])                                   # (thw, 4*C4)

    # ---- BN2 + ReLU -> conv3 (block-diagonal) -> BN3 + ReLU -> store --------
    g = jnp.maximum(d * sb2_ref[0:1, :] + sb2_ref[1:2, :], 0.0)
    y = mm(g, w3_ref[...])                                      # (thw, 4*F)
    y = jnp.maximum(y * sb3_ref[0:1, :] + sb3_ref[1:2, :], 0.0)
    o_ref[...] = y.astype(o_ref.dtype)                          # lane-dense bf16


# ----------------------------------------------------------------------------
# Generation-aware VMEM budget / limit and tile-size selection
# ----------------------------------------------------------------------------
def _vmem_budget_and_limit(user_budget=None):
    try:
        cap = pltpu.get_tpu_info().vmem_capacity_bytes
    except Exception:
        cap = 64 * 1024 * 1024        # conservative fallback (v7x-sized)
    budget = int(cap * 0.40) if user_budget is None else int(user_budget)
    limit = min(int(cap * 0.80), max(2 * budget, 32 * 1024 * 1024))
    return budget, limit


def _pick_tile_h(N, H, W, Cin, C4, F, budget_bytes):
    def lanes(c):
        return -(-c // 128) * 128     # lane padding

    # Live-set estimate per flattened image row (W pixels): double-buffered
    # bf16 in/out blocks plus the in-kernel f32/bf16 intermediates.
    per_row = W * (
        4 * lanes(Cin)                # bf16 x block, 2 buffers
        + 4 * lanes(4 * F)            # bf16 out block, 2 buffers
        + 16 * lanes(C4)              # h00/h01/h10/h11 (f32)
        + 8 * lanes(4 * C4)           # hcat + deconv accumulator (f32)
        + 2 * lanes(4 * C4)           # g (bf16)
        + 6 * lanes(4 * F))           # conv3 accumulator (f32) + bf16 cast
    tile = 1
    for cand in range(1, H + 1):
        if H % cand == 0 and cand * per_row <= budget_bytes:
            tile = cand
    # Guarantee >= 2 grid steps so dual-TensorCore parts (v7x megacore) have
    # work even at batch 1 / single-tile images.
    if N * (H // tile) < 2:
        for cand in range(tile - 1, 0, -1):
            if H % cand == 0:
                tile = cand
                break
    return tile


# ----------------------------------------------------------------------------
# Wrapper
# ----------------------------------------------------------------------------
def decoder_block_pallas(x_nchw, packed, *, tile_h=None, vmem_budget_bytes=None):
    w1, sb1, wd, sb2, w3, sb3 = packed
    N, Cin, H, W = x_nchw.shape
    C4 = w1.shape[1]
    F = w3.shape[1] // 4
    HW = H * W

    # Flat-HW layout keeps every in-kernel tensor 2-D (rows, channels) with a
    # lane-dense channel axis; tiled sub-blocks need W % 8 == 0.
    assert W % 8 == 0 or H == 1, "flat-HW layout requires W % 8 == 0"

    budget, vmem_limit = _vmem_budget_and_limit(vmem_budget_bytes)
    if tile_h is None:
        tile_h = _pick_tile_h(N, H, W, Cin, C4, F, budget)
    assert H % tile_h == 0, (H, tile_h)
    num_tiles = H // tile_h
    thw = tile_h * W

    # bf16 activations: halves the input HBM->VMEM stream and block footprint.
    x_flat = jnp.transpose(x_nchw, (0, 2, 3, 1)).reshape(N, HW, Cin)
    x_flat = x_flat.astype(jnp.bfloat16)

    def x_main_map(n, t):
        return (n, t, 0)

    def x_halo_map(n, t):
        # first image row of the next tile, clamped (content is zeroed
        # in-kernel on the last tile anyway).
        return (n, jnp.minimum((t + 1) * tile_h, H - 1), 0)

    def w_map(n, t):
        return (0, 0)

    out_flat = pl.pallas_call(
        _decoder_block_kernel,
        out_shape=jax.ShapeDtypeStruct((N, HW, 4 * F), jnp.bfloat16),
        grid_spec=pltpu.PrefetchScalarGridSpec(
            num_scalar_prefetch=0,
            grid=(N, num_tiles),
            in_specs=[
                pl.BlockSpec((pl.Squeezed(), thw, Cin), x_main_map),
                pl.BlockSpec((pl.Squeezed(), W, Cin), x_halo_map),
                pl.BlockSpec(w1.shape, w_map),
                pl.BlockSpec(sb1.shape, w_map),
                pl.BlockSpec(wd.shape, w_map),
                pl.BlockSpec(sb2.shape, w_map),
                pl.BlockSpec(w3.shape, w_map),
                pl.BlockSpec(sb3.shape, w_map),
            ],
            out_specs=pl.BlockSpec((pl.Squeezed(), thw, 4 * F),
                                   lambda n, t: (n, t, 0)),
        ),
        compiler_params=pltpu.CompilerParams(
            dimension_semantics=("parallel", "parallel"),
            vmem_limit_bytes=vmem_limit),
    )(x_flat, x_flat, w1, sb1, wd, sb2, w3, sb3)

    # Pixel-shuffle of the lane-packed phases back to NCHW (layout glue only,
    # done in bf16), then a final cast to the module's f32 output contract.
    o = out_flat.reshape(N, H, W, 2, 2, F)                  # (n, p, q, a, b, f)
    o = jnp.transpose(o, (0, 5, 1, 3, 2, 4))                # (n, f, p, a, q, b)
    return o.reshape(N, F, 2 * H, 2 * W).astype(jnp.float32)


# ----------------------------------------------------------------------------
# Deterministic parameter construction + packing
# ----------------------------------------------------------------------------
def init_raw_params(key, in_channels, n_filters):
    C4 = in_channels // 4
    ks = jax.random.split(key, 20)

    def rnd(k, shape, scale=0.1):
        return scale * jax.random.normal(k, shape, jnp.float32)

    def bn(k0, k1, k2, k3, c):
        return dict(gamma=1.0 + rnd(k0, (c,)),
                    beta=rnd(k1, (c,)),
                    mean=rnd(k2, (c,)),
                    var=0.5 + jax.random.uniform(k3, (c,), jnp.float32))

    return dict(
        w1=rnd(ks[0], (C4, in_channels, 1, 1)),        # Conv2d(Cin, C4, 1)
        b1=rnd(ks[1], (C4,)),
        bn1=bn(ks[2], ks[3], ks[4], ks[5], C4),
        wt=rnd(ks[6], (C4, C4, 3, 3)),                 # ConvTranspose2d (in,out,kh,kw)
        bd=rnd(ks[7], (C4,)),
        bn2=bn(ks[8], ks[9], ks[10], ks[11], C4),
        w3=rnd(ks[12], (n_filters, C4, 1, 1)),         # Conv2d(C4, n_filters, 1)
        b3=rnd(ks[13], (n_filters,)),
        bn3=bn(ks[14], ks[15], ks[16], ks[17], n_filters),
    )


def _fold_bn(conv_bias, p, eps=1e-5):
    s = p["gamma"] / jnp.sqrt(p["var"] + eps)
    t = p["beta"] + (conv_bias - p["mean"]) * s
    return jnp.stack([s, t], axis=0).astype(jnp.float32)   # (2, C)


def pack_params(raw, eps=1e-5):
    bf16 = jnp.bfloat16
    C4 = raw["w1"].shape[0]
    F = raw["w3"].shape[0]

    w1 = jnp.transpose(raw["w1"][:, :, 0, 0], (1, 0)).astype(bf16)     # (Cin, C4)
    sb1 = _fold_bn(raw["b1"], raw["bn1"], eps)                         # (2, C4)

    # ConvTranspose weight (in, out, kh, kw) -> taps T(ky, kx) of shape (in, out).
    wt = jnp.transpose(raw["wt"], (2, 3, 0, 1))

    def T(ky, kx):
        return wt[ky, kx]

    Z = jnp.zeros((C4, C4), jnp.float32)
    # Row blocks: shifted inputs [h00; h01; h10; h11].
    # Col blocks: output phases   [d00 | d01 | d10 | d11] (phase = 2a + b).
    wd = jnp.block([
        [T(1, 1), T(1, 2), T(2, 1), T(2, 2)],
        [Z,       T(1, 0), Z,       T(2, 0)],
        [Z,       Z,       T(0, 1), T(0, 2)],
        [Z,       Z,       Z,       T(0, 0)],
    ]).astype(bf16)                                                    # (4C4, 4C4)
    sb2 = jnp.tile(_fold_bn(raw["bd"], raw["bn2"], eps), (1, 4))       # (2, 4C4)

    w3_1 = jnp.transpose(raw["w3"][:, :, 0, 0], (1, 0))                # (C4, F)
    Zf = jnp.zeros((C4, F), jnp.float32)
    # Block-diagonal so one matmul emits the lane-packed (thw, 4F) output.
    w3 = jnp.block([
        [w3_1, Zf,   Zf,   Zf],
        [Zf,   w3_1, Zf,   Zf],
        [Zf,   Zf,   w3_1, Zf],
        [Zf,   Zf,   Zf,   w3_1],
    ]).astype(bf16)                                                    # (4C4, 4F)
    sb3 = jnp.tile(_fold_bn(raw["b3"], raw["bn3"], eps), (1, 4))       # (2, 4F)
    return (w1, sb1, wd, sb2, w3, sb3)


# ----------------------------------------------------------------------------
# Pure-JAX reference with the same precision policy (bf16 operands, f32 acc)
# ----------------------------------------------------------------------------
def reference_forward(x_nchw, raw, eps=1e-5):
    bf16, f32 = jnp.bfloat16, jnp.float32
    x = jnp.transpose(x_nchw, (0, 2, 3, 1))                            # NHWC

    def bn(y, p):
        return (y - p["mean"]) / jnp.sqrt(p["var"] + eps) * p["gamma"] + p["beta"]

    y = jnp.einsum("nhwc,oc->nhwo", x.astype(bf16),
                   raw["w1"][:, :, 0, 0].astype(bf16),
                   preferred_element_type=f32) + raw["b1"]
    y = jax.nn.relu(bn(y, raw["bn1"]))

    # ConvTranspose2d(k=3, s=2, p=1, op=1) == dilated conv with flipped kernel.
    K = jnp.transpose(jnp.flip(raw["wt"], axis=(2, 3)), (2, 3, 0, 1))  # HWIO
    y = lax.conv_general_dilated(
        y.astype(bf16), K.astype(bf16), window_strides=(1, 1),
        padding=((1, 2), (1, 2)), lhs_dilation=(2, 2),
        dimension_numbers=("NHWC", "HWIO", "NHWC"),
        preferred_element_type=f32) + raw["bd"]
    y = jax.nn.relu(bn(y, raw["bn2"]))

    y = jnp.einsum("nhwc,oc->nhwo", y.astype(bf16),
                   raw["w3"][:, :, 0, 0].astype(bf16),
                   preferred_element_type=f32) + raw["b3"]
    y = jax.nn.relu(bn(y, raw["bn3"]))
    return jnp.transpose(y, (0, 3, 1, 2))                              # NCHW


# ----------------------------------------------------------------------------
if __name__ == "__main__":
    N, Cin, H, W = 2, 16, 8, 8
    n_filters = 8

    key = jax.random.PRNGKey(0)
    k_x, k_p = jax.random.split(key)
    x = jax.random.normal(k_x, (N, Cin, H, W), jnp.float32)

    raw = init_raw_params(k_p, Cin, n_filters)
    packed = pack_params(raw)
    ref = reference_forward(x, raw)

    # tile_h=None: auto tile (single spatial tile at this size).
    # tile_h=4: forces 2 spatial tiles so the halo / last-tile paths run too.
    for tile_override in (None, 4):
        out = jax.block_until_ready(
            decoder_block_pallas(x, packed, tile_h=tile_override))
        assert out.shape == (N, n_filters, 2 * H, 2 * W), out.shape
        err = float(jnp.max(jnp.abs(out - ref)))
        if not jnp.allclose(out, ref, atol=2e-2, rtol=2e-2):
            raise AssertionError(
                f"mismatch vs reference (tile_h={tile_override}), "
                f"max abs err = {err}")

    print("KERNEL_OK")
</pallas_src>

<mosaic_0001>
module attributes {stable_mosaic.version = 11 : i64} {
  func.func @_decoder_block_kernel(%arg0: i32, %arg1: i32, %arg2: memref<1x64x16xbf16, #tpu.memory_space<vmem>>, %arg3: memref<1x8x16xbf16, #tpu.memory_space<vmem>>, %arg4: memref<16x4xbf16, #tpu.memory_space<vmem>>, %arg5: memref<2x4xf32, #tpu.memory_space<vmem>>, %arg6: memref<16x16xbf16, #tpu.memory_space<vmem>>, %arg7: memref<2x16xf32, #tpu.memory_space<vmem>>, %arg8: memref<16x32xbf16, #tpu.memory_space<vmem>>, %arg9: memref<2x32xf32, #tpu.memory_space<vmem>>, %arg10: memref<1x64x32xbf16, #tpu.memory_space<vmem>>) attributes {dimension_semantics = [#tpu.dimension_semantics<parallel>, #tpu.dimension_semantics<parallel>], iteration_bounds = array<i64: 2, 1>, scalar_prefetch = 0 : i64, scratch_operands = 0 : i64, tpu.core_type = #tpu.core_type<tc>, window_params = [{transform_indices = @transform_0, window_bounds = array<i64: 1, 64, 16>}, {transform_indices = @transform_1, window_bounds = array<i64: 1, 8, 16>}, {pipeline_mode = #tpu.pipeline_mode<synchronous>, transform_indices = @transform_2, window_bounds = array<i64: 16, 4>}, {pipeline_mode = #tpu.pipeline_mode<synchronous>, transform_indices = @transform_3, window_bounds = array<i64: 2, 4>}, {pipeline_mode = #tpu.pipeline_mode<synchronous>, transform_indices = @transform_4, window_bounds = array<i64: 16, 16>}, {pipeline_mode = #tpu.pipeline_mode<synchronous>, transform_indices = @transform_5, window_bounds = array<i64: 2, 16>}, {pipeline_mode = #tpu.pipeline_mode<synchronous>, transform_indices = @transform_6, window_bounds = array<i64: 16, 32>}, {pipeline_mode = #tpu.pipeline_mode<synchronous>, transform_indices = @transform_7, window_bounds = array<i64: 2, 32>}, {transform_indices = @transform_8, window_bounds = array<i64: 1, 64, 32>}]} {
    %c0 = arith.constant 0 : index
    %c0_0 = arith.constant 0 : index
    %0 = vector.load %arg4[%c0, %c0_0] : memref<16x4xbf16, #tpu.memory_space<vmem>>, vector<16x4xbf16>
    %c0_1 = arith.constant 0 : index
    %c0_2 = arith.constant 0 : index
    %1 = vector.load %arg5[%c0_1, %c0_2] : memref<2x4xf32, #tpu.memory_space<vmem>>, vector<1x4xf32>
    %c1 = arith.constant 1 : index
    %c0_3 = arith.constant 0 : index
    %2 = vector.load %arg5[%c1, %c0_3] : memref<2x4xf32, #tpu.memory_space<vmem>>, vector<1x4xf32>
    %c0_4 = arith.constant 0 : index
    %c0_5 = arith.constant 0 : index
    %c0_6 = arith.constant 0 : index
    %3 = vector.load %arg2[%c0_4, %c0_5, %c0_6] : memref<1x64x16xbf16, #tpu.memory_space<vmem>>, vector<1x64x16xbf16>
    %4 = vector.shape_cast %3 : vector<1x64x16xbf16> to vector<64x16xbf16>
    %cst = arith.constant dense<0.000000e+00> : vector<64x4xf32>
    %5 = tpu.matmul %4, %0, %cst {dimension_numbers = #tpu.dot_dimension_numbers<[1], [0], [0], [1], [0, 0, 1, 1], [], []>} : vector<64x16xbf16>, vector<16x4xbf16>, vector<64x4xf32> -> vector<64x4xf32>
    %6 = vector.broadcast %1 : vector<1x4xf32> to vector<64x4xf32>
    %7 = arith.mulf %5, %6 : vector<64x4xf32>
    %8 = vector.broadcast %2 : vector<1x4xf32> to vector<64x4xf32>
    %9 = arith.addf %7, %8 : vector<64x4xf32>
    %cst_7 = arith.constant 0.000000e+00 : f32
    %10 = vector.broadcast %cst_7 : f32 to vector<64x4xf32>
    %11 = arith.maximumf %9, %10 : vector<64x4xf32>
    %c0_8 = arith.constant 0 : index
    %c0_9 = arith.constant 0 : index
    %c0_10 = arith.constant 0 : index
    %12 = vector.load %arg3[%c0_8, %c0_9, %c0_10] : memref<1x8x16xbf16, #tpu.memory_space<vmem>>, vector<1x8x16xbf16>
    %13 = vector.shape_cast %12 : vector<1x8x16xbf16> to vector<8x16xbf16>
    %cst_11 = arith.constant dense<0.000000e+00> : vector<8x4xf32>
    %14 = tpu.matmul %13, %0, %cst_11 {dimension_numbers = #tpu.dot_dimension_numbers<[1], [0], [0], [1], [0, 0, 1, 1], [], []>} : vector<8x16xbf16>, vector<16x4xbf16>, vector<8x4xf32> -> vector<8x4xf32>
    %15 = vector.broadcast %1 : vector<1x4xf32> to vector<8x4xf32>
    %16 = arith.mulf %14, %15 : vector<8x4xf32>
    %17 = vector.broadcast %2 : vector<1x4xf32> to vector<8x4xf32>
    %18 = arith.addf %16, %17 : vector<8x4xf32>
    %cst_12 = arith.constant 0.000000e+00 : f32
    %19 = vector.broadcast %cst_12 : f32 to vector<8x4xf32>
    %20 = arith.maximumf %18, %19 : vector<8x4xf32>
    %c0_i32 = arith.constant 0 : i32
    %21 = arith.cmpi eq, %arg1, %c0_i32 : i32
    %cst_13 = arith.constant 0.000000e+00 : f32
    %cst_14 = arith.constant 1.000000e+00 : f32
    %22 = arith.select %21, %cst_13, %cst_14 : f32
    %23 = vector.broadcast %22 : f32 to vector<8x4xf32>
    %24 = arith.mulf %23, %20 : vector<8x4xf32>
    %25 = vector.extract_strided_slice %11 {offsets = [8, 0], sizes = [56, 4], strides = [1, 1]} : vector<64x4xf32> to vector<56x4xf32>
    %26 = tpu.concatenate %25, %24 in 0 : vector<56x4xf32>, vector<8x4xf32> -> vector<64x4xf32>
    %27 = tpu.iota {dimensions = array<i32: 0>} : vector<64x1xi32>
    %c8_i32 = arith.constant 8 : i32
    %c0_i32_15 = arith.constant 0 : i32
    %28 = arith.cmpi eq, %c8_i32, %c0_i32_15 : i32
    %c1_i32 = arith.constant 1 : i32
    %29 = arith.select %28, %c1_i32, %c8_i32 : i32
    %30 = vector.broadcast %29 : i32 to vector<64x1xi32>
    %31 = arith.remsi %27, %30 : vector<64x1xi32>
    %c0_i32_16 = arith.constant 0 : i32
    %32 = vector.broadcast %c0_i32_16 : i32 to vector<64x1xi32>
    %33 = arith.cmpi ne, %31, %32 : vector<64x1xi32>
    %c0_i32_17 = arith.constant 0 : i32
    %34 = vector.broadcast %c0_i32_17 : i32 to vector<64x1xi32>
    %35 = arith.cmpi slt, %31, %34 : vector<64x1xi32>
    %c0_i32_18 = arith.constant 0 : i32
    %36 = arith.cmpi slt, %29, %c0_i32_18 : i32
    %37 = vector.broadcast %36 : i1 to vector<64x1xi1>
    %38 = vector.broadcast %37 : vector<64x1xi1> to vector<64x1xi1>
    %39 = arith.xori %35, %38 : vector<64x1xi1>
    %40 = arith.andi %39, %33 : vector<64x1xi1>
    %41 = vector.broadcast %29 : i32 to vector<64x1xi32>
    %42 = arith.addi %31, %41 : vector<64x1xi32>
    %43 = arith.select %40, %42, %31 : vector<64x1xi1>, vector<64x1xi32>
    %c7_i32 = arith.constant 7 : i32
    %44 = vector.broadcast %c7_i32 : i32 to vector<64x1xi32>
    %45 = arith.cmpi ne, %43, %44 : vector<64x1xi32>
    %c63_i32 = arith.constant 63 : i32
    %46 = tpu.dynamic_rotate %11 by %c63_i32 dim 0 : vector<64x4xf32>, i32 -> vector<64x4xf32>
    %cst_19 = arith.constant 0.000000e+00 : f32
    %47 = vector.shape_cast %45 : vector<64x1xi1> to vector<64x1xi1>
    %48 = vector.broadcast %47 : vector<64x1xi1> to vector<64x4xi1>
    %49 = vector.broadcast %cst_19 : f32 to vector<64x4xf32>
    %50 = arith.select %48, %46, %49 : vector<64x4xi1>, vector<64x4xf32>
    %c63_i32_20 = arith.constant 63 : i32
    %51 = tpu.dynamic_rotate %26 by %c63_i32_20 dim 0 : vector<64x4xf32>, i32 -> vector<64x4xf32>
    %cst_21 = arith.constant 0.000000e+00 : f32
    %52 = vector.shape_cast %45 : vector<64x1xi1> to vector<64x1xi1>
    %53 = vector.broadcast %52 : vector<64x1xi1> to vector<64x4xi1>
    %54 = vector.broadcast %cst_21 : f32 to vector<64x4xf32>
    %55 = arith.select %53, %51, %54 : vector<64x4xi1>, vector<64x4xf32>
    %56 = tpu.concatenate %11, %50, %26, %55 in 1 : vector<64x4xf32>, vector<64x4xf32>, vector<64x4xf32>, vector<64x4xf32> -> vector<64x16xf32>
    %c0_22 = arith.constant 0 : index
    %c0_23 = arith.constant 0 : index
    %57 = vector.load %arg6[%c0_22, %c0_23] : memref<16x16xbf16, #tpu.memory_space<vmem>>, vector<16x16xbf16>
    %58 = arith.truncf %56 : vector<64x16xf32> to vector<64x16xbf16>
    %cst_24 = arith.constant dense<0.000000e+00> : vector<64x16xf32>
    %59 = tpu.matmul %58, %57, %cst_24 {dimension_numbers = #tpu.dot_dimension_numbers<[1], [0], [0], [1], [0, 0, 1, 1], [], []>} : vector<64x16xbf16>, vector<16x16xbf16>, vector<64x16xf32> -> vector<64x16xf32>
    %c0_25 = arith.constant 0 : index
    %c0_26 = arith.constant 0 : index
    %60 = vector.load %arg7[%c0_25, %c0_26] : memref<2x16xf32, #tpu.memory_space<vmem>>, vector<1x16xf32>
    %61 = vector.broadcast %60 : vector<1x16xf32> to vector<64x16xf32>
    %62 = arith.mulf %59, %61 : vector<64x16xf32>
    %c1_27 = arith.constant 1 : index
    %c0_28 = arith.constant 0 : index
    %63 = vector.load %arg7[%c1_27, %c0_28] : memref<2x16xf32, #tpu.memory_space<vmem>>, vector<1x16xf32>
    %64 = vector.broadcast %63 : vector<1x16xf32> to vector<64x16xf32>
    %65 = arith.addf %62, %64 : vector<64x16xf32>
    %cst_29 = arith.constant 0.000000e+00 : f32
    %66 = vector.broadcast %cst_29 : f32 to vector<64x16xf32>
    %67 = arith.maximumf %65, %66 : vector<64x16xf32>
    %c0_30 = arith.constant 0 : index
    %c0_31 = arith.constant 0 : index
    %68 = vector.load %arg8[%c0_30, %c0_31] : memref<16x32xbf16, #tpu.memory_space<vmem>>, vector<16x32xbf16>
    %69 = arith.truncf %67 : vector<64x16xf32> to vector<64x16xbf16>
    %cst_32 = arith.constant dense<0.000000e+00> : vector<64x32xf32>
    %70 = tpu.matmul %69, %68, %cst_32 {dimension_numbers = #tpu.dot_dimension_numbers<[1], [0], [0], [1], [0, 0, 1, 1], [], []>} : vector<64x16xbf16>, vector<16x32xbf16>, vector<64x32xf32> -> vector<64x32xf32>
    %c0_33 = arith.constant 0 : index
    %c0_34 = arith.constant 0 : index
    %71 = vector.load %arg9[%c0_33, %c0_34] : memref<2x32xf32, #tpu.memory_space<vmem>>, vector<1x32xf32>
    %72 = vector.broadcast %71 : vector<1x32xf32> to vector<64x32xf32>
    %73 = arith.mulf %70, %72 : vector<64x32xf32>
    %c1_35 = arith.constant 1 : index
    %c0_36 = arith.constant 0 : index
    %74 = vector.load %arg9[%c1_35, %c0_36] : memref<2x32xf32, #tpu.memory_space<vmem>>, vector<1x32xf32>
    %75 = vector.broadcast %74 : vector<1x32xf32> to vector<64x32xf32>
    %76 = arith.addf %73, %75 : vector<64x32xf32>
    %cst_37 = arith.constant 0.000000e+00 : f32
    %77 = vector.broadcast %cst_37 : f32 to vector<64x32xf32>
    %78 = arith.maximumf %76, %77 : vector<64x32xf32>
    %79 = arith.truncf %78 : vector<64x32xf32> to vector<64x32xbf16>
    %c0_38 = arith.constant 0 : index
    %c0_39 = arith.constant 0 : index
    %c0_40 = arith.constant 0 : index
    %80 = vector.load %arg10[%c0_38, %c0_39, %c0_40] : memref<1x64x32xbf16, #tpu.memory_space<vmem>>, vector<1x64x32xbf16>
    %81 = vector.shape_cast %80 : vector<1x64x32xbf16> to vector<64x32xbf16>
    %82 = vector.shape_cast %79 : vector<64x32xbf16> to vector<1x64x32xbf16>
    tpu.vector_store %arg10[%c0_38, %c0_39, %c0_40], %82 {strides = array<i32>} : memref<1x64x32xbf16, #tpu.memory_space<vmem>>, vector<1x64x32xbf16>,
    return
  }
  func.func @transform_0(%arg0: i32, %arg1: i32) -> (i32, i32, i32) {
    %c0_i32 = arith.constant 0 : i32
    %c0_i32_0 = arith.constant 0 : i32
    return %arg0, %arg1, %c0_i32 : i32, i32, i32
  }
  func.func @transform_1(%arg0: i32, %arg1: i32) -> (i32, i32, i32) {
    %c1_i32 = arith.constant 1 : i32
    %0 = arith.addi %arg1, %c1_i32 : i32
    %c8_i32 = arith.constant 8 : i32
    %1 = arith.muli %0, %c8_i32 : i32
    %c7_i32 = arith.constant 7 : i32
    %2 = arith.minsi %1, %c7_i32 : i32
    %c0_i32 = arith.constant 0 : i32
    %c0_i32_0 = arith.constant 0 : i32
    return %arg0, %2, %c0_i32 : i32, i32, i32
  }
  func.func @transform_2(%arg0: i32, %arg1: i32) -> (i32, i32) {
    %c0_i32 = arith.constant 0 : i32
    %c0_i32_0 = arith.constant 0 : i32
    %c0_i32_1 = arith.constant 0 : i32
    return %c0_i32, %c0_i32_0 : i32, i32
  }
  func.func @transform_3(%arg0: i32, %arg1: i32) -> (i32, i32) {
    %c0_i32 = arith.constant 0 : i32
    %c0_i32_0 = arith.constant 0 : i32
    %c0_i32_1 = arith.constant 0 : i32
    return %c0_i32, %c0_i32_0 : i32, i32
  }
  func.func @transform_4(%arg0: i32, %arg1: i32) -> (i32, i32) {
    %c0_i32 = arith.constant 0 : i32
    %c0_i32_0 = arith.constant 0 : i32
    %c0_i32_1 = arith.constant 0 : i32
    return %c0_i32, %c0_i32_0 : i32, i32
  }
  func.func @transform_5(%arg0: i32, %arg1: i32) -> (i32, i32) {
    %c0_i32 = arith.constant 0 : i32
    %c0_i32_0 = arith.constant 0 : i32
    %c0_i32_1 = arith.constant 0 : i32
    return %c0_i32, %c0_i32_0 : i32, i32
  }
  func.func @transform_6(%arg0: i32, %arg1: i32) -> (i32, i32) {
    %c0_i32 = arith.constant 0 : i32
    %c0_i32_0 = arith.constant 0 : i32
    %c0_i32_1 = arith.constant 0 : i32
    return %c0_i32, %c0_i32_0 : i32, i32
  }
  func.func @transform_7(%arg0: i32, %arg1: i32) -> (i32, i32) {
    %c0_i32 = arith.constant 0 : i32
    %c0_i32_0 = arith.constant 0 : i32
    %c0_i32_1 = arith.constant 0 : i32
    return %c0_i32, %c0_i32_0 : i32, i32
  }
  func.func @transform_8(%arg0: i32, %arg1: i32) -> (i32, i32, i32) {
    %c0_i32 = arith.constant 0 : i32
    %c0_i32_0 = arith.constant 0 : i32
    return %arg0, %arg1, %c0_i32 : i32, i32, i32
  }
}

</mosaic_0001>

<llo_original>
// kernel: tpu_custom_call.1
$region0: #{tpu_custom_call.1}
  #allocation0 [shape = 'u32[]', space=smem, size = 0x4, offset = 0x4, fixed_abs, tag = 'smem constant byte address 0x4 - core index']
  #allocation1 [shape = 'u32[72,128]{1,0:T(1,128)}', space=vmem, size = 0x9000, scoped, tag = 'internal scratch']
  %s0 = inlined_call_operand.vmem [shape: bf16[2,64,16], index: 0, kind: input, shape index: {}]
  %s1 = inlined_call_operand.vmem [shape: bf16[2,64,16], index: 1, kind: input, shape index: {}]
  %s2 = inlined_call_operand.vmem [shape: bf16[16,4], index: 2, kind: input, shape index: {}]
  %s3 = inlined_call_operand.vmem [shape: f32[2,4], index: 3, kind: input, shape index: {}]
  %s4 = inlined_call_operand.vmem [shape: bf16[16,16], index: 4, kind: input, shape index: {}]
  %s5 = inlined_call_operand.vmem [shape: f32[2,16], index: 5, kind: input, shape index: {}]
  %s6 = inlined_call_operand.vmem [shape: bf16[16,32], index: 6, kind: input, shape index: {}]
  %s7 = inlined_call_operand.vmem [shape: f32[2,32], index: 7, kind: input, shape index: {}]
  %s8 = inlined_call_operand.vmem [shape: bf16[2,64,32], index: 8, kind: output, shape index: {}]
  %s9 = sld [smem:[#allocation0]]
  $region65: #{tpu_custom_call.1} parent=0
    _
  %s11 = ssub.s32 1, %s9
  %s12 = scalar_select 0, %s11, %s9
  loop: start=0, step=1, limit=4
  $region2: #{tpu_custom_call.1} parent=0 // loop_pre_header
    _
  $region3: #{tpu_custom_call.1} parent=0 // loop_header
    %s14 = sphi 0, %s18
    %p15 = scmp.ge.s32.totalorder %s14, 4
    %s21 = sphi 0, %s33
    %s22 = sphi 0, %s29
    %s23 = sphi 0, %s21
    %s24 = sphi 0, %s22
    %s25 = sphi 0, %s23
    %s26 = sphi 0, %s24
    %s38 = sphi 0, %s40
    %s41 = sphi 0, %s38
    %s42 = sphi 0, %s41
    %s58 = sphi 0, %s42
    %s74 = sphi 0, %s76
    %s77 = sphi 0, %s74
    %s78 = sphi 0, %s77
    %s94 = sphi 0, %s78
    %s98 = sphi 0, %s98
    %s100 = sphi 0, %s98
    %s101 = sphi 0, %s100
    %s115 = sphi 0, %s101
    %s119 = sphi 0, %s119
    %s121 = sphi 0, %s119
    %s122 = sphi 0, %s121
    %s136 = sphi 0, %s122
    %s140 = sphi 0, %s140
    %s142 = sphi 0, %s140
    %s143 = sphi 0, %s142
    %s157 = sphi 0, %s143
    %s161 = sphi 0, %s161
    %s163 = sphi 0, %s161
    %s164 = sphi 0, %s163
    %s178 = sphi 0, %s164
    %s182 = sphi 0, %s182
    %s184 = sphi 0, %s182
    %s185 = sphi 0, %s184
    %s199 = sphi 0, %s185
    %s203 = sphi 0, %s203
    %s205 = sphi 0, %s203
    %s206 = sphi 0, %s205
    %s220 = sphi 0, %s206
    %s228 = sphi 0, %s230
    %s231 = sphi 0, %s228
    %s232 = sphi 0, %s231
    %s248 = sphi 0, %s232
  $region4: #{tpu_custom_call.1} parent=0 // loop_header_branch
    %17 = sbr.rel (%p15) target = $region8
  $region5: #{tpu_custom_call.1} parent=0 // loop_body
    %s19 = ssub.s32 %s14, 1
    %s20 = ssub.s32 %s14, 2
    %s27 = sadd.s32 1, %s22
    %p28 = scmp.ge.s32.totalorder %s27, 1
    %s29 = scalar_select %p28, 0, %s27
    %s30 = sadd.s32 1, %s21
    %s31 = scalar_select %p28, %s30, %s21
    %p32 = scmp.ge.s32.totalorder %s31, 2
    %s33 = scalar_select %p32, 0, %s31
    %s34 = ssub.s32 %s21, %s33
    %s35 = ssub.s32 %s22, %s29
    %s36 = sor.u32 %s34, %s35
    %p37 = scmp.eq.s32.totalorder %s36, 0
    %s39 = sadd.s32 %s38, 1
    %s40 = scalar_select %p37, %s38, %s39
    %p43 = pneg %p37
    %p44 = scmp.eq.s32.totalorder %s14, 1
    %p45 = por %p43, %p44
    %p46 = scmp.ne.s32.totalorder %s38, %s41
    %p47 = scmp.eq.s32.totalorder %s14, 0
    %p48 = por %p46, %p47
    %p49 = scmp.ne.s32.totalorder %s38, %s41
    %p50 = scmp.eq.s32.totalorder %s19, 1
    %p51 = por %p49, %p50
    %p52 = scmp.ne.s32.totalorder %s41, %s42
    %p53 = scmp.eq.s32.totalorder %s19, 0
    %p54 = por %p52, %p53
    %p55 = scmp.ne.s32.totalorder %s41, %s42
    %p56 = scmp.eq.s32.totalorder %s20, 1
    %p57 = por %p55, %p56
    %p59 = scmp.ne.s32.totalorder %s42, %s58
    %p60 = scmp.eq.s32.totalorder %s20, 0
    %p61 = por %p59, %p60
    %s62 = sadd.s32 %s22, 1
    %s63 = smul.u32 %s62, 8
    %p64 = scmp.lt.s32.totalorder %s63, 7
    %s65 = scalar_select %p64, %s63, 7
    %s66 = sadd.s32 %s29, 1
    %s67 = smul.u32 %s66, 8
    %p68 = scmp.lt.s32.totalorder %s67, 7
    %s69 = scalar_select %p68, %s67, 7
    %s70 = ssub.s32 %s21, %s33
    %s71 = ssub.s32 %s65, %s69
    %s72 = sor.u32 %s70, %s71
    %p73 = scmp.eq.s32.totalorder %s72, 0
    %s75 = sadd.s32 %s74, 1
    %s76 = scalar_select %p73, %s74, %s75
    %p79 = pneg %p73
    %p80 = scmp.eq.s32.totalorder %s14, 1
    %p81 = por %p79, %p80
    %p82 = scmp.ne.s32.totalorder %s74, %s77
    %p83 = scmp.eq.s32.totalorder %s14, 0
    %p84 = por %p82, %p83
    %p85 = scmp.ne.s32.totalorder %s74, %s77
    %p86 = scmp.eq.s32.totalorder %s19, 1
    %p87 = por %p85, %p86
    %p88 = scmp.ne.s32.totalorder %s77, %s78
    %p89 = scmp.eq.s32.totalorder %s19, 0
    %p90 = por %p88, %p89
    %p91 = scmp.ne.s32.totalorder %s77, %s78
    %p92 = scmp.eq.s32.totalorder %s20, 1
    %p93 = por %p91, %p92
    %p95 = scmp.ne.s32.totalorder %s78, %s94
    %p96 = scmp.eq.s32.totalorder %s20, 0
    %p97 = por %p95, %p96
    %s99 = sadd.s32 %s98, 1
    %p102 = scmp.eq.s32.totalorder %s14, 1
    %p103 = scmp.ne.s32.totalorder %s98, %s100
    %p104 = scmp.eq.s32.totalorder %s14, 0
    %p105 = por %p103, %p104
    %p106 = scmp.ne.s32.totalorder %s98, %s100
    %p107 = scmp.eq.s32.totalorder %s19, 1
    %p108 = por %p106, %p107
    %p109 = scmp.ne.s32.totalorder %s100, %s101
    %p110 = scmp.eq.s32.totalorder %s19, 0
    %p111 = por %p109, %p110
    %p112 = scmp.ne.s32.totalorder %s100, %s101
    %p113 = scmp.eq.s32.totalorder %s20, 1
    %p114 = por %p112, %p113
    %p116 = scmp.ne.s32.totalorder %s101, %s115
    %p117 = scmp.eq.s32.totalorder %s20, 0
    %p118 = por %p116, %p117
    %s120 = sadd.s32 %s119, 1
    %p123 = scmp.eq.s32.totalorder %s14, 1
    %p124 = scmp.ne.s32.totalorder %s119, %s121
    %p125 = scmp.eq.s32.totalorder %s14, 0
    %p126 = por %p124, %p125
    %p127 = scmp.ne.s32.totalorder %s119, %s121
    %p128 = scmp.eq.s32.totalorder %s19, 1
    %p129 = por %p127, %p128
    %p130 = scmp.ne.s32.totalorder %s121, %s122
    %p131 = scmp.eq.s32.totalorder %s19, 0
    %p132 = por %p130, %p131
    %p133 = scmp.ne.s32.totalorder %s121, %s122
    %p134 = scmp.eq.s32.totalorder %s20, 1
    %p135 = por %p133, %p134
    %p137 = scmp.ne.s32.totalorder %s122, %s136
    %p138 = scmp.eq.s32.totalorder %s20, 0
    %p139 = por %p137, %p138
    %s141 = sadd.s32 %s140, 1
    %p144 = scmp.eq.s32.totalorder %s14, 1
    %p145 = scmp.ne.s32.totalorder %s140, %s142
    %p146 = scmp.eq.s32.totalorder %s14, 0
    %p147 = por %p145, %p146
    %p148 = scmp.ne.s32.totalorder %s140, %s142
    %p149 = scmp.eq.s32.totalorder %s19, 1
    %p150 = por %p148, %p149
    %p151 = scmp.ne.s32.totalorder %s142, %s143
    %p152 = scmp.eq.s32.totalorder %s19, 0
    %p153 = por %p151, %p152
    %p154 = scmp.ne.s32.totalorder %s142, %s143
    %p155 = scmp.eq.s32.totalorder %s20, 1
    %p156 = por %p154, %p155
    %p158 = scmp.ne.s32.totalorder %s143, %s157
    %p159 = scmp.eq.s32.totalorder %s20, 0
    %p160 = por %p158, %p159
    %s162 = sadd.s32 %s161, 1
    %p165 = scmp.eq.s32.totalorder %s14, 1
    %p166 = scmp.ne.s32.totalorder %s161, %s163
    %p167 = scmp.eq.s32.totalorder %s14, 0
    %p168 = por %p166, %p167
    %p169 = scmp.ne.s32.totalorder %s161, %s163
    %p170 = scmp.eq.s32.totalorder %s19, 1
    %p171 = por %p169, %p170
    %p172 = scmp.ne.s32.totalorder %s163, %s164
    %p173 = scmp.eq.s32.totalorder %s19, 0
    %p174 = por %p172, %p173
    %p175 = scmp.ne.s32.totalorder %s163, %s164
    %p176 = scmp.eq.s32.totalorder %s20, 1
    %p177 = por %p175, %p176
    %p179 = scmp.ne.s32.totalorder %s164, %s178
    %p180 = scmp.eq.s32.totalorder %s20, 0
    %p181 = por %p179, %p180
    %s183 = sadd.s32 %s182, 1
    %p186 = scmp.eq.s32.totalorder %s14, 1
    %p187 = scmp.ne.s32.totalorder %s182, %s184
    %p188 = scmp.eq.s32.totalorder %s14, 0
    %p189 = por %p187, %p188
    %p190 = scmp.ne.s32.totalorder %s182, %s184
    %p191 = scmp.eq.s32.totalorder %s19, 1
    %p192 = por %p190, %p191
    %p193 = scmp.ne.s32.totalorder %s184, %s185
    %p194 = scmp.eq.s32.totalorder %s19, 0
    %p195 = por %p193, %p194
    %p196 = scmp.ne.s32.totalorder %s184, %s185
    %p197 = scmp.eq.s32.totalorder %s20, 1
    %p198 = por %p196, %p197
    %p200 = scmp.ne.s32.totalorder %s185, %s199
    %p201 = scmp.eq.s32.totalorder %s20, 0
    %p202 = por %p200, %p201
    %s204 = sadd.s32 %s203, 1
    %p207 = scmp.eq.s32.totalorder %s14, 1
    %p208 = scmp.ne.s32.totalorder %s203, %s205
    %p209 = scmp.eq.s32.totalorder %s14, 0
    %p210 = por %p208, %p209
    %p211 = scmp.ne.s32.totalorder %s203, %s205
    %p212 = scmp.eq.s32.totalorder %s19, 1
    %p213 = por %p211, %p212
    %p214 = scmp.ne.s32.totalorder %s205, %s206
    %p215 = scmp.eq.s32.totalorder %s19, 0
    %p216 = por %p214, %p215
    %p217 = scmp.ne.s32.totalorder %s205, %s206
    %p218 = scmp.eq.s32.totalorder %s20, 1
    %p219 = por %p217, %p218
    %p221 = scmp.ne.s32.totalorder %s206, %s220
    %p222 = scmp.eq.s32.totalorder %s20, 0
    %p223 = por %p221, %p222
    %s224 = ssub.s32 %s21, %s33
    %s225 = ssub.s32 %s22, %s29
    %s226 = sor.u32 %s224, %s225
    %p227 = scmp.eq.s32.totalorder %s226, 0
    %s229 = sadd.s32 %s228, 1
    %s230 = scalar_select %p227, %s228, %s229
    %p233 = pneg %p227
    %p234 = scmp.eq.s32.totalorder %s14, 1
    %p235 = por %p233, %p234
    %p236 = scmp.ne.s32.totalorder %s228, %s231
    %p237 = scmp.eq.s32.totalorder %s14, 0
    %p238 = por %p236, %p237
    %p239 = scmp.ne.s32.totalorder %s228, %s231
    %p240 = scmp.eq.s32.totalorder %s19, 1
    %p241 = por %p239, %p240
    %p242 = scmp.ne.s32.totalorder %s231, %s232
    %p243 = scmp.eq.s32.totalorder %s19, 0
    %p244 = por %p242, %p243
    %p245 = scmp.ne.s32.totalorder %s231, %s232
    %p246 = scmp.eq.s32.totalorder %s20, 1
    %p247 = por %p245, %p246
    %p249 = scmp.ne.s32.totalorder %s232, %s248
    %p250 = scmp.eq.s32.totalorder %s20, 0
    %p251 = por %p249, %p250
    %p252 = scmp.le.s32.totalorder 1, %s14
    %p253 = scmp.lt.s32.totalorder %s14, 3
    %p254 = pnand %p252, %p253
    %p255 = pneg %p254
    // Predicated region
    $region9: #{tpu_custom_call.1} parent=5 // pred_check
      _
    $region10: #{tpu_custom_call.1} parent=5 // pred_check_branch
      %257 = sbr.rel (%p254) target = $region12
    $region11: #{tpu_custom_call.1} parent=5 // pred_region
      %s258 = ssub.s32 %s14, 1
      // Predicated region
      $region13: #{tpu_custom_call.1} parent=11 // pred_check
        %p259 = pneg %p111
      $region14: #{tpu_custom_call.1} parent=11 // pred_check_branch
        %261 = sbr.rel (%p259) target = $region16
      $region15: #{tpu_custom_call.1} parent=11 // pred_region
        _
      $region16: #{tpu_custom_call.1} parent=11 // pred_fallthru
        _
      // Predicated region
      $region17: #{tpu_custom_call.1} parent=11 // pred_check
        %p262 = pneg %p132
      $region18: #{tpu_custom_call.1} parent=11 // pred_check_branch
        %264 = sbr.rel (%p262) target = $region20
      $region19: #{tpu_custom_call.1} parent=11 // pred_region
        _
      $region20: #{tpu_custom_call.1} parent=11 // pred_fallthru
        _
      // Predicated region
      $region21: #{tpu_custom_call.1} parent=11 // pred_check
        %p265 = pneg %p153
      $region22: #{tpu_custom_call.1} parent=11 // pred_check_branch
        %267 = sbr.rel (%p265) target = $region24
      $region23: #{tpu_custom_call.1} parent=11 // pred_region
        _
      $region24: #{tpu_custom_call.1} parent=11 // pred_fallthru
        _
      // Predicated region
      $region25: #{tpu_custom_call.1} parent=11 // pred_check
        %p268 = pneg %p174
      $region26: #{tpu_custom_call.1} parent=11 // pred_check_branch
        %270 = sbr.rel (%p268) target = $region28
      $region27: #{tpu_custom_call.1} parent=11 // pred_region
        _
      $region28: #{tpu_custom_call.1} parent=11 // pred_fallthru
        _
      // Predicated region
      $region29: #{tpu_custom_call.1} parent=11 // pred_check
        %p271 = pneg %p195
      $region30: #{tpu_custom_call.1} parent=11 // pred_check_branch
        %273 = sbr.rel (%p271) target = $region32
      $region31: #{tpu_custom_call.1} parent=11 // pred_region
        _
      $region32: #{tpu_custom_call.1} parent=11 // pred_fallthru
        _
      // Predicated region
      $region33: #{tpu_custom_call.1} parent=11 // pred_check
        %p274 = pneg %p216
      $region34: #{tpu_custom_call.1} parent=11 // pred_check_branch
        %276 = sbr.rel (%p274) target = $region36
      $region35: #{tpu_custom_call.1} parent=11 // pred_region
        _
      $region36: #{tpu_custom_call.1} parent=11 // pred_fallthru
        _
    $region12: #{tpu_custom_call.1} parent=5 // pred_fallthru
      _
    %p277 = scmp.lt.s32.totalorder %s14, 2
    // Predicated region
    $region37: #{tpu_custom_call.1} parent=5 // pred_check
      %p278 = pneg %p277
    $region38: #{tpu_custom_call.1} parent=5 // pred_check_branch
      %280 = sbr.rel (%p278) target = $region40
    $region39: #{tpu_custom_call.1} parent=5 // pred_region
      // Predicated region
      $region41: #{tpu_custom_call.1} parent=39 // pred_check
        %p281 = pneg %p48
      $region42: #{tpu_custom_call.1} parent=39 // pred_check_branch
        %283 = sbr.rel (%p281) target = $region44
      $region43: #{tpu_custom_call.1} parent=39 // pred_region
        %s284 = smul.u32 8, %s22
        %p285 = scmp.lt.s32.totalorder %s21, 1
        %s286 = scalar_select %p285, %s21, 1
        %p287 = scmp.lt.s32.totalorder %s284, 7
        %s288 = scalar_select %p287, %s284, 7
        %s289 = smul.addr %s286, 8
        %s290 = sadd.s32 %s288, %s289
        %s291 = smul.addr %s290, 4
        %s292 = scalar_lea.vmem %s0, %s291
        %s293 = smul.u32 8, %s22
      $region44: #{tpu_custom_call.1} parent=39 // pred_fallthru
        _
      // Predicated region
      $region45: #{tpu_custom_call.1} parent=39 // pred_check
        %p294 = pneg %p84
      $region46: #{tpu_custom_call.1} parent=39 // pred_check_branch
        %296 = sbr.rel (%p294) target = $region48
      $region47: #{tpu_custom_call.1} parent=39 // pred_region
        %s297 = sadd.s32 %s22, 1
        %s298 = smul.u32 %s297, 8
        %p299 = scmp.lt.s32.totalorder %s298, 7
        %s300 = scalar_select %p299, %s298, 7
        %p301 = scmp.lt.s32.totalorder %s21, 1
        %s302 = scalar_select %p301, %s21, 1
        %p303 = scmp.lt.s32.totalorder %s300, 7
        %s304 = scalar_select %p303, %s300, 7
        %s305 = smul.addr %s302, 8
        %s306 = sadd.s32 %s304, %s305
        %s307 = smul.addr %s306, 4
        %s308 = scalar_lea.vmem %s1, %s307
        %s309 = sadd.s32 %s22, 1
        %s310 = smul.u32 %s309, 8
        %p311 = scmp.lt.s32.totalorder %s310, 7
        %s312 = scalar_select %p311, %s310, 7
      $region48: #{tpu_custom_call.1} parent=39 // pred_fallthru
        _
    $region40: #{tpu_custom_call.1} parent=5 // pred_fallthru
      _
    %p313 = scmp.le.s32.totalorder 1, %s14
    %p314 = scmp.lt.s32.totalorder %s14, 3
    %p315 = pnand %p313, %p314
    %p316 = pneg %p315
    // Predicated region
    $region49: #{tpu_custom_call.1} parent=5 // pred_check
      _
    $region50: #{tpu_custom_call.1} parent=5 // pred_check_branch
      %318 = sbr.rel (%p315) target = $region52
    $region51: #{tpu_custom_call.1} parent=5 // pred_region
      %s319 = ssub.s32 %s14, 1
      %s320 = smul.u32 8, %s24
      %p321 = scmp.lt.s32.totalorder %s23, 1
      %s322 = scalar_select %p321, %s23, 1
      %p323 = scmp.lt.s32.totalorder %s320, 7
      %s324 = scalar_select %p323, %s320, 7
      %s325 = smul.addr %s322, 8
      %s326 = sadd.s32 %s324, %s325
      %s327 = smul.addr %s326, 4
      %s328 = scalar_lea.vmem %s0, %s327
      %p329 = pneg %p54
      %p330 = pneg %p51
      %s331 = sadd.s32 %s24, 1
      %s332 = smul.u32 %s331, 8
      %p333 = scmp.lt.s32.totalorder %s332, 7
      %s334 = scalar_select %p333, %s332, 7
      %p335 = scmp.lt.s32.totalorder %s23, 1
      %s336 = scalar_select %p335, %s23, 1
      %p337 = scmp.lt.s32.totalorder %s334, 7
      %s338 = scalar_select %p337, %s334, 7
      %s339 = smul.addr %s336, 8
      %s340 = sadd.s32 %s338, %s339
      %s341 = smul.addr %s340, 4
      %s342 = scalar_lea.vmem %s1, %s341
      %p343 = pneg %p90
      %p344 = pneg %p87
      %p345 = pneg %p111
      %p346 = pneg %p108
      %p347 = pneg %p132
      %p348 = pneg %p129
      %p349 = pneg %p153
      %p350 = pneg %p150
      %p351 = pneg %p174
      %p352 = pneg %p171
      %p353 = pneg %p195
      %p354 = pneg %p192
      %p355 = pneg %p216
      %p356 = pneg %p213
      %p357 = pneg %p244
      %p358 = pneg %p241
      %s359 = smul.u32 8, %s24
      %p360 = scmp.lt.s32.totalorder %s23, 1
      %s361 = scalar_select %p360, %s23, 1
      %p362 = scmp.lt.s32.totalorder %s359, 7
      %s363 = scalar_select %p362, %s359, 7
      %s364 = smul.addr %s361, 8
      %s365 = sadd.s32 %s363, %s364
      %s366 = smul.addr %s365, 4
      %s367 = scalar_lea.vmem %s8, %s366
      %s368 = smul.u32 8, %s24
      %p369 = scmp.lt.s32.totalorder %s23, 1
      %s370 = scalar_select %p369, %s23, 1
      %p371 = scmp.lt.s32.totalorder %s368, 7
      %s372 = scalar_select %p371, %s368, 7
      %s373 = smul.addr %s370, 8
      %s374 = sadd.s32 %s372, %s373
      %s375 = smul.addr %s374, 4
      %s376 = scalar_lea.vmem %s0, %s375
      %s377 = smul.u32 8, %s24
      %s378 = sadd.s32 %s24, 1
      %s379 = smul.u32 %s378, 8
      %p380 = scmp.lt.s32.totalorder %s379, 7
      %s381 = scalar_select %p380, %s379, 7
      %p382 = scmp.lt.s32.totalorder %s23, 1
      %s383 = scalar_select %p382, %s23, 1
      %p384 = scmp.lt.s32.totalorder %s381, 7
      %s385 = scalar_select %p384, %s381, 7
      %s386 = smul.addr %s383, 8
      %s387 = sadd.s32 %s385, %s386
      %s388 = smul.addr %s387, 4
      %s389 = scalar_lea.vmem %s1, %s388
      %s390 = sadd.s32 %s24, 1
      %s391 = smul.u32 %s390, 8
      %p392 = scmp.lt.s32.totalorder %s391, 7
      %s393 = scalar_select %p392, %s391, 7
      %s394 = smul.u32 8, %s24
      %p395 = scmp.lt.s32.totalorder %s23, 1
      %s396 = scalar_select %p395, %s23, 1
      %p397 = scmp.lt.s32.totalorder %s394, 7
      %s398 = scalar_select %p397, %s394, 7
      %s399 = smul.addr %s396, 8
      %s400 = sadd.s32 %s398, %s399
      %s401 = smul.addr %s400, 4
      %s402 = scalar_lea.vmem %s8, %s401
      %s403 = smul.u32 8, %s24
      %v405 = vld [vmem:[%s2] sm:$0xf]
      %v406 = vld [vmem:[%s2 + $0x4] sm:$0xf]
      %v407 = vld [vmem:[%s3] sm:$0x1]
      %v408 = vld [vmem:[%s3 + $0x1] sm:$0x1]
      %v409 = vld [vmem:[%s376] sm:$0xf]
      %v410 = vld [vmem:[%s376 + $0x4] sm:$0xf]
      %v411 = vld [vmem:[%s376 + $0x8] sm:$0xf]
      %v412 = vld [vmem:[%s376 + $0xc] sm:$0xf]
      %v413 = vld [vmem:[%s376 + $0x10] sm:$0xf]
      %v414 = vld [vmem:[%s376 + $0x14] sm:$0xf]
      %v415 = vld [vmem:[%s376 + $0x18] sm:$0xf]
      %v416 = vld [vmem:[%s376 + $0x1c] sm:$0xf]
      %v425 = vunpack.c.l.b16 %v409
      %v426 = vunpack.c.l.b16 %v410
      %v427 = vunpack.c.l.b16 %v411
      %v428 = vunpack.c.l.b16 %v412
      %v429 = vunpack.c.l.b16 %v413
      %v430 = vunpack.c.l.b16 %v414
      %v431 = vunpack.c.l.b16 %v415
      %v432 = vunpack.c.l.b16 %v416
      %v433 = vpack.c.b16 %v426, %v425
      %v434 = vpack.c.b16 %v428, %v427
      %v435 = vpack.c.b16 %v430, %v429
      %v436 = vpack.c.b16 %v432, %v431
      %v439 = vunpack.c.l.b16 %v405
      %v440 = vunpack.c.l.b16 %v406
      %v441 = vpack.c.b16 %v440, %v439
      %vm443 = vcmask 130048
      %v445 = vsel %vm443, %v433, 0
      %v448 = vsel %vm443, %v434, 0
      %v451 = vsel %vm443, %v435, 0
      %v454 = vsel %vm443, %v436, 0
      %456 = vmatpush.bf16.msra.mxu0 0
      %457 = vmatpush.bf16.msra.mxu0 0
      %458 = vmatpush.bf16.msra.mxu0 0
      %459 = vmatpush.bf16.msra.mxu0 0
      %460 = vmatpush.bf16.msra.mxu0 0
      %461 = vmatpush.bf16.msra.mxu0 0
      %462 = vmatpush.bf16.msra.mxu0 0
      %463 = vmatpush.bf16.msra.mxu0 %v441
      %464 = vmatmul.bf16.gmra.mxu0 %v445
      %v465 = vpop.f32.mrf.mxu0
      %v466 = vadd.f32 0.0, %v465
      %v467 = vpop.f32.mrf.mxu0
      %v468 = vadd.f32 0.0, %v467
      %469 = vmatmul.bf16.gmra.mxu0 %v448
      %v470 = vpop.f32.mrf.mxu0
      %v471 = vadd.f32 0.0, %v470
      %v472 = vpop.f32.mrf.mxu0
      %v473 = vadd.f32 0.0, %v472
      %474 = vmatmul.bf16.gmra.mxu0 %v451
      %v475 = vpop.f32.mrf.mxu0
      %v476 = vadd.f32 0.0, %v475
      %v477 = vpop.f32.mrf.mxu0
      %v478 = vadd.f32 0.0, %v477
      %479 = vmatmul.bf16.gmra.mxu0 %v454
      %v480 = vpop.f32.mrf.mxu0
      %v481 = vadd.f32 0.0, %v480
      %v482 = vpop.f32.mrf.mxu0
      %v483 = vadd.f32 0.0, %v482
      %484 = vdwg.mxu0
      %v485 = vperm.slane %v407, 0
      %v486 = vmul.f32 %v466, %v485
      %v487 = vmul.f32 %v468, %v485
      %v488 = vmul.f32 %v471, %v485
      %v489 = vmul.f32 %v473, %v485
      %v490 = vmul.f32 %v476, %v485
      %v491 = vmul.f32 %v478, %v485
      %v492 = vmul.f32 %v481, %v485
      %v493 = vmul.f32 %v483, %v485
      %v494 = vperm.slane %v408, 0
      %v495 = vadd.f32 %v486, %v494
      %v496 = vadd.f32 %v487, %v494
      %v497 = vadd.f32 %v488, %v494
      %v498 = vadd.f32 %v489, %v494
      %v499 = vadd.f32 %v490, %v494
      %v500 = vadd.f32 %v491, %v494
      %v501 = vadd.f32 %v492, %v494
      %v502 = vadd.f32 %v493, %v494
      %v503 = vmax.f32 %v495, 0.0
      %v504 = vmax.f32 %v496, 0.0
      %v505 = vmax.f32 %v497, 0.0
      %v506 = vmax.f32 %v498, 0.0
      %v507 = vmax.f32 %v499, 0.0
      %v508 = vmax.f32 %v500, 0.0
      %v509 = vmax.f32 %v501, 0.0
      %v510 = vmax.f32 %v502, 0.0
      %v511 = vld [vmem:[%s389] sm:$0xf]
      %v513 = vsel %vm443, %v511, 0
      %515 = vmatpush.bf16.msra.mxu0 0
      %516 = vmatpush.bf16.msra.mxu0 0
      %517 = vmatpush.bf16.msra.mxu0 0
      %518 = vmatpush.bf16.msra.mxu0 0
      %519 = vmatpush.bf16.msra.mxu0 0
      %520 = vmatpush.bf16.msra.mxu0 0
      %521 = vmatpush.bf16.msra.mxu0 0
      %522 = vmatpush.bf16.msra.mxu0 %v441
      %523 = vmatmul.bf16.gmra.mxu0 %v513
      %v524 = vpop.f32.mrf.mxu0
      %v525 = vadd.f32 0.0, %v524
      %v526 = vpop.f32.mrf.mxu0
      %527 = vdwg.mxu0
      %v528 = vmul.f32 %v525, %v485
      %v529 = vadd.f32 %v528, %v494
      %v530 = vmax.f32 %v529, 0.0
      %p531 = scmp.eq.s32.totalorder %s24, 0
      %s532 = scalar_select %p531, 0.0, 1.0
      %v533 = vstv %s532
      %v534 = vmul.f32 %v533, %v530
      %v535 = vlaneseq
      %v536 = vshrl.u32 %v535, 7
      %v537 = vadd.s32 %v536, 8
      %v538 = vadd.s32 %v536, 16
      %v539 = vadd.s32 %v536, 24
      %v540 = vadd.s32 %v536, 32
      %v541 = vadd.s32 %v536, 40
      %v542 = vadd.s32 %v536, 48
      %v543 = vadd.s32 %v536, 56
      %vm544 = vcmp.lt.s32.totalorder %v536, 0
      %v545 = vsub.s32 0, %v536
      %v546 = vsel %vm544, %v545, %v536
      %v547 = vshrl.u32 %v546, 3
      %v548 = vand.u32 %v546, 7
      %v549 = vsub.s32 0, %v548
      %v550 = vsel %vm544, %v549, %v548
      %vm551 = vcmp.lt.s32.totalorder %v537, 0
      %v552 = vsub.s32 0, %v537
      %v553 = vsel %vm551, %v552, %v537
      %v554 = vshrl.u32 %v553, 3
      %v555 = vand.u32 %v553, 7
      %v556 = vsub.s32 0, %v555
      %v557 = vsel %vm551, %v556, %v555
      %vm558 = vcmp.lt.s32.totalorder %v538, 0
      %v559 = vsub.s32 0, %v538
      %v560 = vsel %vm558, %v559, %v538
      %v561 = vshrl.u32 %v560, 3
      %v562 = vand.u32 %v560, 7
      %v563 = vsub.s32 0, %v562
      %v564 = vsel %vm558, %v563, %v562
      %vm565 = vcmp.lt.s32.totalorder %v539, 0
      %v566 = vsub.s32 0, %v539
      %v567 = vsel %vm565, %v566, %v539
      %v568 = vshrl.u32 %v567, 3
      %v569 = vand.u32 %v567, 7
      %v570 = vsub.s32 0, %v569
      %v571 = vsel %vm565, %v570, %v569
      %vm572 = vcmp.lt.s32.totalorder %v540, 0
      %v573 = vsub.s32 0, %v540
      %v574 = vsel %vm572, %v573, %v540
      %v575 = vshrl.u32 %v574, 3
      %v576 = vand.u32 %v574, 7
      %v577 = vsub.s32 0, %v576
      %v578 = vsel %vm572, %v577, %v576
      %vm579 = vcmp.lt.s32.totalorder %v541, 0
      %v580 = vsub.s32 0, %v541
      %v581 = vsel %vm579, %v580, %v541
      %v582 = vshrl.u32 %v581, 3
      %v583 = vand.u32 %v581, 7
      %v584 = vsub.s32 0, %v583
      %v585 = vsel %vm579, %v584, %v583
      %vm586 = vcmp.lt.s32.totalorder %v542, 0
      %v587 = vsub.s32 0, %v542
      %v588 = vsel %vm586, %v587, %v542
      %v589 = vshrl.u32 %v588, 3
      %v590 = vand.u32 %v588, 7
      %v591 = vsub.s32 0, %v590
      %v592 = vsel %vm586, %v591, %v590
      %vm593 = vcmp.lt.s32.totalorder %v543, 0
      %v594 = vsub.s32 0, %v543
      %v595 = vsel %vm593, %v594, %v543
      %v596 = vshrl.u32 %v595, 3
      %v597 = vand.u32 %v595, 7
      %v598 = vsub.s32 0, %v597
      %v599 = vsel %vm593, %v598, %v597
      %vm600 = vcmp.ne.s32.totalorder %v550, 0
      %vm601 = vcmp.ne.s32.totalorder %v557, 0
      %vm602 = vcmp.ne.s32.totalorder %v564, 0
      %vm603 = vcmp.ne.s32.totalorder %v571, 0
      %vm604 = vcmp.ne.s32.totalorder %v578, 0
      %vm605 = vcmp.ne.s32.totalorder %v585, 0
      %vm606 = vcmp.ne.s32.totalorder %v592, 0
      %vm607 = vcmp.ne.s32.totalorder %v599, 0
      %vm608 = vcmp.lt.s32.totalorder %v550, 0
      %vm609 = vcmp.lt.s32.totalorder %v557, 0
      %vm610 = vcmp.lt.s32.totalorder %v564, 0
      %vm611 = vcmp.lt.s32.totalorder %v571, 0
      %vm612 = vcmp.lt.s32.totalorder %v578, 0
      %vm613 = vcmp.lt.s32.totalorder %v585, 0
      %vm614 = vcmp.lt.s32.totalorder %v592, 0
      %vm615 = vcmp.lt.s32.totalorder %v599, 0
      %vm616 = vmand %vm608, %vm600
      %vm617 = vmand %vm609, %vm601
      %vm618 = vmand %vm610, %vm602
      %vm619 = vmand %vm611, %vm603
      %vm620 = vmand %vm612, %vm604
      %vm621 = vmand %vm613, %vm605
      %vm622 = vmand %vm614, %vm606
      %vm623 = vmand %vm615, %vm607
      %v624 = vadd.s32 %v550, 8
      %v625 = vadd.s32 %v557, 8
      %v626 = vadd.s32 %v564, 8
      %v627 = vadd.s32 %v571, 8
      %v628 = vadd.s32 %v578, 8
      %v629 = vadd.s32 %v585, 8
      %v630 = vadd.s32 %v592, 8
      %v631 = vadd.s32 %v599, 8
      %v632 = vsel %vm616, %v624, %v550
      %v633 = vsel %vm617, %v625, %v557
      %v634 = vsel %vm618, %v626, %v564
      %v635 = vsel %vm619, %v627, %v571
      %v636 = vsel %vm620, %v628, %v578
      %v637 = vsel %vm621, %v629, %v585
      %v638 = vsel %vm622, %v630, %v592
      %v639 = vsel %vm623, %v631, %v599
      %vm640 = vcmp.ne.s32.totalorder %v632, 7
      %vm641 = vcmp.ne.s32.totalorder %v633, 7
      %vm642 = vcmp.ne.s32.totalorder %v634, 7
      %vm643 = vcmp.ne.s32.totalorder %v635, 7
      %vm644 = vcmp.ne.s32.totalorder %v636, 7
      %vm645 = vcmp.ne.s32.totalorder %v637, 7
      %vm646 = vcmp.ne.s32.totalorder %v638, 7
      %vm647 = vcmp.ne.s32.totalorder %v639, 7
      %v648 = vrot.slane %v503, 1
      %v649 = vrot.slane %v504, 1
      %v650 = vrot.slane %v505, 1
      %v651 = vrot.slane %v506, 1
      %v652 = vrot.slane %v507, 1
      %v653 = vrot.slane %v508, 1
      %v654 = vrot.slane %v509, 1
      %v655 = vrot.slane %v510, 1
      %vm656 = vcmp.lt.s32.totalorder %v536, 7
      %v657 = vsel %vm656, %v654, %v655
      %v658 = vsel %vm656, %v653, %v654
      %v659 = vsel %vm656, %v652, %v653
      %v660 = vsel %vm656, %v651, %v652
      %v661 = vsel %vm656, %v650, %v651
      %v662 = vsel %vm656, %v649, %v650
      %v663 = vsel %vm656, %v648, %v649
      %v664 = vsel %vm656, %v655, %v648
      %v665 = vsel %vm640, 1, 0
      %v666 = vsel %vm641, 1, 0
      %v667 = vsel %vm642, 1, 0
      %v668 = vsel %vm643, 1, 0
      %v669 = vsel %vm644, 1, 0
      %v670 = vsel %vm645, 1, 0
      %v671 = vsel %vm646, 1, 0
      %v672 = vsel %vm647, 1, 0
      %vm673 = vcmp.eq.s32.totalorder %v665, 1
      %vm674 = vcmp.eq.s32.totalorder %v666, 1
      %vm675 = vcmp.eq.s32.totalorder %v667, 1
      %vm676 = vcmp.eq.s32.totalorder %v668, 1
      %vm677 = vcmp.eq.s32.totalorder %v669, 1
      %vm678 = vcmp.eq.s32.totalorder %v670, 1
      %vm679 = vcmp.eq.s32.totalorder %v671, 1
      %vm680 = vcmp.eq.s32.totalorder %v672, 1
      %v681 = vsel %vm673, %v663, 0.0
      %v682 = vsel %vm674, %v662, 0.0
      %v683 = vsel %vm675, %v661, 0.0
      %v684 = vsel %vm676, %v660, 0.0
      %v685 = vsel %vm677, %v659, 0.0
      %v686 = vsel %vm678, %v658, 0.0
      %v687 = vsel %vm679, %v657, 0.0
      %v688 = vsel %vm680, %v664, 0.0
      %v689 = vrot.slane %v534, 1
      %v690 = vsel %vm656, %v655, %v689
      %v691 = vsel %vm656, %v689, %v649
      %v692 = vsel %vm673, %v662, 0.0
      %v693 = vsel %vm674, %v661, 0.0
      %v694 = vsel %vm675, %v660, 0.0
      %v695 = vsel %vm676, %v659, 0.0
      %v696 = vsel %vm677, %v658, 0.0
      %v697 = vsel %vm678, %v657, 0.0
      %v698 = vsel %vm679, %v690, 0.0
      %v699 = vsel %vm680, %v691, 0.0
      %708 = vrot.lane.b32.xlu0 %v681, 4
      %v709 = vpop.permute.xlu0 %708
      %710 = vrot.lane.b32.xlu0 %v682, 4
      %v711 = vpop.permute.xlu0 %710
      %712 = vrot.lane.b32.xlu0 %v683, 4
      %v713 = vpop.permute.xlu0 %712
      %714 = vrot.lane.b32.xlu0 %v684, 4
      %v715 = vpop.permute.xlu0 %714
      %716 = vrot.lane.b32.xlu0 %v685, 4
      %v717 = vpop.permute.xlu0 %716
      %718 = vrot.lane.b32.xlu0 %v686, 4
      %v719 = vpop.permute.xlu0 %718
      %720 = vrot.lane.b32.xlu0 %v687, 4
      %v721 = vpop.permute.xlu0 %720
      %722 = vrot.lane.b32.xlu0 %v688, 4
      %v723 = vpop.permute.xlu0 %722
      %740 = vrot.lane.b32.xlu0 %v504, 8
      %v741 = vpop.permute.xlu0 %740
      %742 = vrot.lane.b32.xlu0 %v505, 8
      %v743 = vpop.permute.xlu0 %742
      %744 = vrot.lane.b32.xlu0 %v506, 8
      %v745 = vpop.permute.xlu0 %744
      %746 = vrot.lane.b32.xlu0 %v507, 8
      %v747 = vpop.permute.xlu0 %746
      %748 = vrot.lane.b32.xlu0 %v508, 8
      %v749 = vpop.permute.xlu0 %748
      %750 = vrot.lane.b32.xlu0 %v509, 8
      %v751 = vpop.permute.xlu0 %750
      %752 = vrot.lane.b32.xlu0 %v510, 8
      %v753 = vpop.permute.xlu0 %752
      %754 = vrot.lane.b32.xlu0 %v534, 8
      %v755 = vpop.permute.xlu0 %754
      %772 = vrot.lane.b32.xlu0 %v692, 12
      %v773 = vpop.permute.xlu0 %772
      %774 = vrot.lane.b32.xlu0 %v693, 12
      %v775 = vpop.permute.xlu0 %774
      %776 = vrot.lane.b32.xlu0 %v694, 12
      %v777 = vpop.permute.xlu0 %776
      %778 = vrot.lane.b32.xlu0 %v695, 12
      %v779 = vpop.permute.xlu0 %778
      %780 = vrot.lane.b32.xlu0 %v696, 12
      %v781 = vpop.permute.xlu0 %780
      %782 = vrot.lane.b32.xlu0 %v697, 12
      %v783 = vpop.permute.xlu0 %782
      %784 = vrot.lane.b32.xlu0 %v698, 12
      %v785 = vpop.permute.xlu0 %784
      %786 = vrot.lane.b32.xlu0 %v699, 12
      %v787 = vpop.permute.xlu0 %786
      %vm796 = vcmask 31744
      %v797 = vsel %vm796, %v503, %v709
      %v798 = vsel %vm796, %v504, %v711
      %v799 = vsel %vm796, %v505, %v713
      %v800 = vsel %vm796, %v506, %v715
      %v801 = vsel %vm796, %v507, %v717
      %v802 = vsel %vm796, %v508, %v719
      %v803 = vsel %vm796, %v509, %v721
      %v804 = vsel %vm796, %v510, %v723
      %vm805 = vcmask 64512
      %v806 = vsel %vm805, %v797, %v741
      %v807 = vsel %vm805, %v798, %v743
      %v808 = vsel %vm805, %v799, %v745
      %v809 = vsel %vm805, %v800, %v747
      %v810 = vsel %vm805, %v801, %v749
      %v811 = vsel %vm805, %v802, %v751
      %v812 = vsel %vm805, %v803, %v753
      %v813 = vsel %vm805, %v804, %v755
      %vm814 = vcmask 97280
      %v815 = vsel %vm814, %v806, %v773
      %v816 = vsel %vm814, %v807, %v775
      %v817 = vsel %vm814, %v808, %v777
      %v818 = vsel %vm814, %v809, %v779
      %v819 = vsel %vm814, %v810, %v781
      %v820 = vsel %vm814, %v811, %v783
      %v821 = vsel %vm814, %v812, %v785
      %v822 = vsel %vm814, %v813, %v787
      %v823 = vld [vmem:[%s4] sm:$0xf]
      %v824 = vld [vmem:[%s4 + $0x4] sm:$0xf]
      %v825 = vpack.c.bf16 %v816, %v815
      %v826 = vpack.c.bf16 %v818, %v817
      %v827 = vpack.c.bf16 %v820, %v819
      %v828 = vpack.c.bf16 %v822, %v821
      %v831 = vunpack.c.l.b16 %v823
      %v832 = vunpack.c.l.b16 %v824
      %v833 = vpack.c.b16 %v832, %v831
      %v836 = vsel %vm443, %v825, 0
      %v839 = vsel %vm443, %v826, 0
      %v842 = vsel %vm443, %v827, 0
      %v845 = vsel %vm443, %v828, 0
      %847 = vmatpush.bf16.msra.mxu0 0
      %848 = vmatpush.bf16.msra.mxu0 0
      %849 = vmatpush.bf16.msra.mxu0 0
      %850 = vmatpush.bf16.msra.mxu0 0
      %851 = vmatpush.bf16.msra.mxu0 0
      %852 = vmatpush.bf16.msra.mxu0 0
      %853 = vmatpush.bf16.msra.mxu0 0
      %854 = vmatpush.bf16.msra.mxu0 %v833
      %855 = vmatmul.bf16.gmra.mxu0 %v836
      %v856 = vpop.f32.mrf.mxu0
      %v857 = vadd.f32 0.0, %v856
      %v858 = vpop.f32.mrf.mxu0
      %v859 = vadd.f32 0.0, %v858
      %860 = vmatmul.bf16.gmra.mxu0 %v839
      %v861 = vpop.f32.mrf.mxu0
      %v862 = vadd.f32 0.0, %v861
      %v863 = vpop.f32.mrf.mxu0
      %v864 = vadd.f32 0.0, %v863
      %865 = vmatmul.bf16.gmra.mxu0 %v842
      %v866 = vpop.f32.mrf.mxu0
      %v867 = vadd.f32 0.0, %v866
      %v868 = vpop.f32.mrf.mxu0
      %v869 = vadd.f32 0.0, %v868
      %870 = vmatmul.bf16.gmra.mxu0 %v845
      %v871 = vpop.f32.mrf.mxu0
      %v872 = vadd.f32 0.0, %v871
      %v873 = vpop.f32.mrf.mxu0
      %v874 = vadd.f32 0.0, %v873
      %875 = vdwg.mxu0
      %v876 = vld [vmem:[%s5] sm:$0x1]
      %v877 = vperm.slane %v876, 0
      %v878 = vmul.f32 %v857, %v877
      %v879 = vmul.f32 %v859, %v877
      %v880 = vmul.f32 %v862, %v877
      %v881 = vmul.f32 %v864, %v877
      %v882 = vmul.f32 %v867, %v877
      %v883 = vmul.f32 %v869, %v877
      %v884 = vmul.f32 %v872, %v877
      %v885 = vmul.f32 %v874, %v877
      %v886 = vld [vmem:[%s5 + $0x1] sm:$0x1]
      %v887 = vperm.slane %v886, 0
      %v888 = vadd.f32 %v878, %v887
      %v889 = vadd.f32 %v879, %v887
      %v890 = vadd.f32 %v880, %v887
      %v891 = vadd.f32 %v881, %v887
      %v892 = vadd.f32 %v882, %v887
      %v893 = vadd.f32 %v883, %v887
      %v894 = vadd.f32 %v884, %v887
      %v895 = vadd.f32 %v885, %v887
      %v896 = vmax.f32 %v888, 0.0
      %v897 = vmax.f32 %v889, 0.0
      %v898 = vmax.f32 %v890, 0.0
      %v899 = vmax.f32 %v891, 0.0
      %v900 = vmax.f32 %v892, 0.0
      %v901 = vmax.f32 %v893, 0.0
      %v902 = vmax.f32 %v894, 0.0
      %v903 = vmax.f32 %v895, 0.0
      %v904 = vld [vmem:[%s6] sm:$0xf]
      %v905 = vld [vmem:[%s6 + $0x4] sm:$0xf]
      %v906 = vpack.c.bf16 %v897, %v896
      %v907 = vpack.c.bf16 %v899, %v898
      %v908 = vpack.c.bf16 %v901, %v900
      %v909 = vpack.c.bf16 %v903, %v902
      %v912 = vunpack.c.l.b16 %v904
      %v913 = vunpack.c.l.b16 %v905
      %v914 = vpack.c.b16 %v913, %v912
      %v917 = vsel %vm443, %v906, 0
      %v920 = vsel %vm443, %v907, 0
      %v923 = vsel %vm443, %v908, 0
      %v926 = vsel %vm443, %v909, 0
      %928 = vmatpush.bf16.msra.mxu0 0
      %929 = vmatpush.bf16.msra.mxu0 0
      %930 = vmatpush.bf16.msra.mxu0 0
      %931 = vmatpush.bf16.msra.mxu0 0
      %932 = vmatpush.bf16.msra.mxu0 0
      %933 = vmatpush.bf16.msra.mxu0 0
      %934 = vmatpush.bf16.msra.mxu0 0
      %935 = vmatpush.bf16.msra.mxu0 %v914
      %936 = vmatmul.bf16.gmra.mxu0 %v917
      %v937 = vpop.f32.mrf.mxu0
      %v938 = vadd.f32 0.0, %v937
      %v939 = vpop.f32.mrf.mxu0
      %v940 = vadd.f32 0.0, %v939
      %941 = vmatmul.bf16.gmra.mxu0 %v920
      %v942 = vpop.f32.mrf.mxu0
      %v943 = vadd.f32 0.0, %v942
      %v944 = vpop.f32.mrf.mxu0
      %v945 = vadd.f32 0.0, %v944
      %946 = vmatmul.bf16.gmra.mxu0 %v923
      %v947 = vpop.f32.mrf.mxu0
      %v948 = vadd.f32 0.0, %v947
      %v949 = vpop.f32.mrf.mxu0
      %v950 = vadd.f32 0.0, %v949
      %951 = vmatmul.bf16.gmra.mxu0 %v926
      %v952 = vpop.f32.mrf.mxu0
      %v953 = vadd.f32 0.0, %v952
      %v954 = vpop.f32.mrf.mxu0
      %v955 = vadd.f32 0.0, %v954
      %956 = vdwg.mxu0
      %v957 = vld [vmem:[%s7] sm:$0x1]
      %v958 = vperm.slane %v957, 0
      %v959 = vmul.f32 %v938, %v958
      %v960 = vmul.f32 %v940, %v958
      %v961 = vmul.f32 %v943, %v958
      %v962 = vmul.f32 %v945, %v958
      %v963 = vmul.f32 %v948, %v958
      %v964 = vmul.f32 %v950, %v958
      %v965 = vmul.f32 %v953, %v958
      %v966 = vmul.f32 %v955, %v958
      %v967 = vld [vmem:[%s7 + $0x1] sm:$0x1]
      %v968 = vperm.slane %v967, 0
      %v969 = vadd.f32 %v959, %v968
      %v970 = vadd.f32 %v960, %v968
      %v971 = vadd.f32 %v961, %v968
      %v972 = vadd.f32 %v962, %v968
      %v973 = vadd.f32 %v963, %v968
      %v974 = vadd.f32 %v964, %v968
      %v975 = vadd.f32 %v965, %v968
      %v976 = vadd.f32 %v966, %v968
      %v977 = vmax.f32 %v969, 0.0
      %v978 = vmax.f32 %v970, 0.0
      %v979 = vmax.f32 %v971, 0.0
      %v980 = vmax.f32 %v972, 0.0
      %v981 = vmax.f32 %v973, 0.0
      %v982 = vmax.f32 %v974, 0.0
      %v983 = vmax.f32 %v975, 0.0
      %v984 = vmax.f32 %v976, 0.0
      %v985 = vpack.c.bf16 %v977, %v977
      %v986 = vpack.c.bf16 %v978, %v978
      %v987 = vpack.c.bf16 %v979, %v979
      %v988 = vpack.c.bf16 %v980, %v980
      %v989 = vpack.c.bf16 %v981, %v981
      %v990 = vpack.c.bf16 %v982, %v982
      %v991 = vpack.c.bf16 %v983, %v983
      %v992 = vpack.c.bf16 %v984, %v984
      %vm993 = vcmask 257024
      %994 = vst.msk [vmem:[%s402] sm:$0xf] %vm993, %v985
      %995 = vst.msk [vmem:[%s402 + $0x4] sm:$0xf] %vm993, %v986
      %996 = vst.msk [vmem:[%s402 + $0x8] sm:$0xf] %vm993, %v987
      %997 = vst.msk [vmem:[%s402 + $0xc] sm:$0xf] %vm993, %v988
      %998 = vst.msk [vmem:[%s402 + $0x10] sm:$0xf] %vm993, %v989
      %999 = vst.msk [vmem:[%s402 + $0x14] sm:$0xf] %vm993, %v990
      %1000 = vst.msk [vmem:[%s402 + $0x18] sm:$0xf] %vm993, %v991
      %1001 = vst.msk [vmem:[%s402 + $0x1c] sm:$0xf] %vm993, %v992
      %s1002 = smul.u32 8, %s24
      %p1003 = scmp.lt.s32.totalorder %s23, 1
      %s1004 = scalar_select %p1003, %s23, 1
      %p1005 = scmp.lt.s32.totalorder %s1002, 7
      %s1006 = scalar_select %p1005, %s1002, 7
      %s1007 = smul.addr %s1004, 8
      %s1008 = sadd.s32 %s1006, %s1007
      %s1009 = smul.addr %s1008, 4
      %s1010 = scalar_lea.vmem %s8, %s1009
      // Predicated region
      $region53: #{tpu_custom_call.1} parent=51 // pred_check
        %p1011 = pneg %p241
      $region54: #{tpu_custom_call.1} parent=51 // pred_check_branch
        %1013 = sbr.rel (%p1011) target = $region56
      $region55: #{tpu_custom_call.1} parent=51 // pred_region
        %s1014 = smul.u32 8, %s24
      $region56: #{tpu_custom_call.1} parent=51 // pred_fallthru
        _
    $region52: #{tpu_custom_call.1} parent=5 // pred_fallthru
      _
    %p1015 = scmp.le.s32.totalorder 2, %s14
    // Predicated region
    $region57: #{tpu_custom_call.1} parent=5 // pred_check
      %p1016 = pneg %p1015
    $region58: #{tpu_custom_call.1} parent=5 // pred_check_branch
      %1018 = sbr.rel (%p1016) target = $region60
    $region59: #{tpu_custom_call.1} parent=5 // pred_region
      %s1019 = ssub.s32 %s14, 2
      // Predicated region
      $region61: #{tpu_custom_call.1} parent=59 // pred_check
        %p1020 = pneg %p247
      $region62: #{tpu_custom_call.1} parent=59 // pred_check_branch
        %1022 = sbr.rel (%p1020) target = $region64
      $region63: #{tpu_custom_call.1} parent=59 // pred_region
        %s1023 = smul.u32 8, %s26
        %p1024 = scmp.lt.s32.totalorder %s25, 1
        %s1025 = scalar_select %p1024, %s25, 1
        %p1026 = scmp.lt.s32.totalorder %s1023, 7
        %s1027 = scalar_select %p1026, %s1023, 7
        %s1028 = smul.addr %s1025, 8
        %s1029 = sadd.s32 %s1027, %s1028
        %s1030 = smul.addr %s1029, 4
        %s1031 = scalar_lea.vmem %s8, %s1030
      $region64: #{tpu_custom_call.1} parent=59 // pred_fallthru
        _
    $region60: #{tpu_custom_call.1} parent=5 // pred_fallthru
      _
  $region6: #{tpu_custom_call.1} parent=0 // loop_footer
    %s18 = sadd.s32 1, %s14
  $region7: #{tpu_custom_call.1} parent=0 // loop_footer_branch
    %13 = sbr.rel target = $region3
  $region8: #{tpu_custom_call.1} parent=0 // loop_exit
    _

</llo_original>
